<compile_context>
chip_gen: v7x
topology: tpu7x:2x2x1
jax: 0.10.0
libtpu: 0.0.40
codegen_flags: <defaults>
</compile_context>

<pallas_src>
import jax
import jax.numpy as jnp
from jax.experimental import pallas as pl
from jax.experimental.pallas import tpu as pltpu

MXU_DTYPE = jnp.bfloat16   # MXU operand dtype; accumulation stays f32.


def _resblock_kernel(x_ref, w1_ref, w2_ref, mw1_ref, mb1_ref, mw2_ref, mb2_ref,
                     o_ref, xpad_ref):
    # x_ref   : (1, C, L)  f32   one batch element, native PyTorch (C, L) layout
    # w1_ref  : (C, 3C)    bf16  conv1 taps stacked along contraction axis
    # w2_ref  : (C, 3C)    bf16  conv2 taps stacked along contraction axis
    # mw1_ref : (H, C)     bf16 ; mb1_ref : (H, 1) f32
    # mw2_ref : (C, H)     bf16 ; mb2_ref : (C, 1) f32
    # o_ref   : (1, C, L)  f32
    # xpad_ref: (C, L+2)   bf16  VMEM scratch with zero halo columns
    C, Lp2 = xpad_ref.shape
    L = Lp2 - 2

    # ---- Stage conv1 input: zero ONLY the two halo columns, write interior.
    halo = jnp.zeros((C, 1), xpad_ref.dtype)
    xpad_ref[:, 0:1] = halo
    xpad_ref[:, L + 1:L + 2] = halo
    xpad_ref[:, 1:L + 1] = x_ref[0].astype(xpad_ref.dtype)

    def conv3(w_ref):
        # kernel_size=3, padding=1 conv as a single K=3C MXU matmul:
        # stack the 3 shifted windows on the contraction (sublane) axis.
        xcat = jnp.concatenate([xpad_ref[:, k:k + L] for k in range(3)],
                               axis=0)                                # (3C, L) bf16
        return jnp.dot(w_ref[...], xcat,
                       preferred_element_type=jnp.float32)            # (C, L) f32

    # res_unit: Conv1d -> Identity(norm) -> ReLU -> Conv1d -> Identity(norm)
    h1 = jnp.maximum(conv3(w1_ref), 0.0)                              # (C, L) f32
    xpad_ref[:, 1:L + 1] = h1.astype(xpad_ref.dtype)                  # halos stay zero
    y = conv3(w2_ref)                                                 # (C, L) f32

    # ChannelAttention: shared MLP over mean- and max-pooled (over L) channels.
    avg_p = jnp.mean(y, axis=1, keepdims=True)                        # (C, 1) f32
    max_p = jnp.max(y, axis=1, keepdims=True)                         # (C, 1) f32

    def shared_mlp(p):                                                # p: (C, 1) f32
        h = jnp.dot(mw1_ref[...], p.astype(mw1_ref.dtype),
                    preferred_element_type=jnp.float32) + mb1_ref[...]
        h = jnp.maximum(h, 0.0)                                       # (H, 1) f32
        return jnp.dot(mw2_ref[...], h.astype(mw2_ref.dtype),
                       preferred_element_type=jnp.float32) + mb2_ref[...]

    z = shared_mlp(avg_p) + shared_mlp(max_p)                         # (C, 1) f32
    att = pl.reciprocal(1.0 + jnp.exp(-z), approx=True)               # sigmoid (EUP)

    out = att * y + x_ref[0]                                          # scale + residual
    o_ref[0] = jnp.maximum(out, 0.0).astype(o_ref.dtype)              # post-act ReLU


def resblock_forward(x, w1, w2, mw1, mb1, mw2, mb2):
    """x: (B, C, L).  w1, w2: (C, C, 3) Conv1d weights (out, in, k).
    mw1: (C//r, C), mb1: (C//r,), mw2: (C, C//r), mb2: (C,)."""
    B, C, L = x.shape
    H = mw1.shape[0]

    # One-off re-layout of the TINY parameters only (pre-stored in a real model).
    # Stacked conv taps: W_stack[o, k*C + c] = W[o, c, k]  -> (C, 3C), bf16.
    w1_s = jnp.transpose(w1, (0, 2, 1)).reshape(C, 3 * C).astype(MXU_DTYPE)
    w2_s = jnp.transpose(w2, (0, 2, 1)).reshape(C, 3 * C).astype(MXU_DTYPE)
    mw1_c = mw1.astype(MXU_DTYPE)                       # (H, C)
    mw2_c = mw2.astype(MXU_DTYPE)                       # (C, H)
    mb1_c = mb1.reshape(H, 1).astype(jnp.float32)
    mb2_c = mb2.reshape(C, 1).astype(jnp.float32)

    return pl.pallas_call(
        _resblock_kernel,
        out_shape=jax.ShapeDtypeStruct((B, C, L), x.dtype),
        grid_spec=pltpu.PrefetchScalarGridSpec(
            num_scalar_prefetch=0,
            grid=(B,),                                   # one batch element per step
            in_specs=[
                pl.BlockSpec((1, C, L), lambda b: (b, 0, 0)),   # x (native layout)
                pl.BlockSpec((C, 3 * C), lambda b: (0, 0)),     # conv1 taps (resident)
                pl.BlockSpec((C, 3 * C), lambda b: (0, 0)),     # conv2 taps
                pl.BlockSpec((H, C), lambda b: (0, 0)),         # mlp W1
                pl.BlockSpec((H, 1), lambda b: (0, 0)),         # mlp b1
                pl.BlockSpec((C, H), lambda b: (0, 0)),         # mlp W2
                pl.BlockSpec((C, 1), lambda b: (0, 0)),         # mlp b2
            ],
            out_specs=pl.BlockSpec((1, C, L), lambda b: (b, 0, 0)),
            scratch_shapes=[pltpu.VMEM((C, L + 2), MXU_DTYPE)],  # padded staging buf
        ),
        compiler_params=pltpu.CompilerParams(
            dimension_semantics=("parallel",)),          # batch is embarrassingly parallel
    )(x, w1_s, w2_s, mw1_c, mb1_c, mw2_c, mb2_c)


def resblock_ref(x, w1, w2, mw1, mb1, mw2, mb2):
    """Plain-JAX f32 reference mirroring the PyTorch forward."""
    hi = jax.lax.Precision.HIGHEST

    def conv1d(inp, w):
        return jax.lax.conv_general_dilated(
            inp, w, window_strides=(1,), padding=((1, 1),),
            dimension_numbers=("NCH", "OIH", "NCH"), precision=hi)

    h1 = jax.nn.relu(conv1d(x, w1))
    y = conv1d(h1, w2)

    def mlp(p):
        h = jax.nn.relu(jnp.dot(p, mw1.T, precision=hi) + mb1)
        return jnp.dot(h, mw2.T, precision=hi) + mb2

    att = jax.nn.sigmoid(mlp(y.mean(-1)) + mlp(y.max(-1)))
    return jax.nn.relu(att[:, :, None] * y + x)


if __name__ == "__main__":
    B, C, L, ratio = 2, 32, 16, 16
    H = C // ratio

    key = jax.random.PRNGKey(0)
    ks = jax.random.split(key, 7)
    x   = jax.random.normal(ks[0], (B, C, L), dtype=jnp.float32)
    w1  = jax.random.normal(ks[1], (C, C, 3), dtype=jnp.float32) * 0.1
    w2  = jax.random.normal(ks[2], (C, C, 3), dtype=jnp.float32) * 0.1
    mw1 = jax.random.normal(ks[3], (H, C), dtype=jnp.float32) * 0.1
    mb1 = jax.random.normal(ks[4], (H,), dtype=jnp.float32) * 0.1
    mw2 = jax.random.normal(ks[5], (C, H), dtype=jnp.float32) * 0.1
    mb2 = jax.random.normal(ks[6], (C,), dtype=jnp.float32) * 0.1

    out = jax.block_until_ready(resblock_forward(x, w1, w2, mw1, mb1, mw2, mb2))
    ref = resblock_ref(x, w1, w2, mw1, mb1, mw2, mb2)

    assert out.shape == (B, C, L), out.shape
    # bf16 MXU operands + f32 accumulation keep the error well inside 1e-2.
    assert jnp.allclose(out, ref, atol=1e-2, rtol=1e-2), \
        float(jnp.max(jnp.abs(out - ref)))

    print("KERNEL_OK")
</pallas_src>

<mosaic_0001>
module attributes {stable_mosaic.version = 11 : i64} {
  func.func @_resblock_kernel(%arg0: i32, %arg1: memref<1x32x16xf32, #tpu.memory_space<vmem>>, %arg2: memref<32x96xbf16, #tpu.memory_space<vmem>>, %arg3: memref<32x96xbf16, #tpu.memory_space<vmem>>, %arg4: memref<2x32xbf16, #tpu.memory_space<vmem>>, %arg5: memref<2x1xf32, #tpu.memory_space<vmem>>, %arg6: memref<32x2xbf16, #tpu.memory_space<vmem>>, %arg7: memref<32x1xf32, #tpu.memory_space<vmem>>, %arg8: memref<1x32x16xf32, #tpu.memory_space<vmem>>, %arg9: memref<32x18xbf16, #tpu.memory_space<vmem>>) attributes {dimension_semantics = [#tpu.dimension_semantics<parallel>], iteration_bounds = array<i64: 2>, scalar_prefetch = 0 : i64, scratch_operands = 1 : i64, tpu.core_type = #tpu.core_type<tc>, window_params = [{transform_indices = @transform_0, window_bounds = array<i64: 1, 32, 16>}, {pipeline_mode = #tpu.pipeline_mode<synchronous>, transform_indices = @transform_1, window_bounds = array<i64: 32, 96>}, {pipeline_mode = #tpu.pipeline_mode<synchronous>, transform_indices = @transform_2, window_bounds = array<i64: 32, 96>}, {pipeline_mode = #tpu.pipeline_mode<synchronous>, transform_indices = @transform_3, window_bounds = array<i64: 2, 32>}, {pipeline_mode = #tpu.pipeline_mode<synchronous>, transform_indices = @transform_4, window_bounds = array<i64: 2, 1>}, {pipeline_mode = #tpu.pipeline_mode<synchronous>, transform_indices = @transform_5, window_bounds = array<i64: 32, 2>}, {pipeline_mode = #tpu.pipeline_mode<synchronous>, transform_indices = @transform_6, window_bounds = array<i64: 32, 1>}, {transform_indices = @transform_7, window_bounds = array<i64: 1, 32, 16>}]} {
    %cst = arith.constant 0.000000e+00 : bf16
    %0 = vector.broadcast %cst : bf16 to vector<32x1xbf16>
    %c0 = arith.constant 0 : index
    %c0_0 = arith.constant 0 : index
    %1 = vector.load %arg9[%c0, %c0_0] : memref<32x18xbf16, #tpu.memory_space<vmem>>, vector<32x1xbf16>
    tpu.vector_store %arg9[%c0, %c0_0], %0 {strides = array<i32>} : memref<32x18xbf16, #tpu.memory_space<vmem>>, vector<32x1xbf16>,
    %c0_1 = arith.constant 0 : index
    %c17 = arith.constant 17 : index
    %2 = vector.load %arg9[%c0_1, %c17] : memref<32x18xbf16, #tpu.memory_space<vmem>>, vector<32x1xbf16>
    tpu.vector_store %arg9[%c0_1, %c17], %0 {strides = array<i32>} : memref<32x18xbf16, #tpu.memory_space<vmem>>, vector<32x1xbf16>,
    %c0_2 = arith.constant 0 : index
    %c0_3 = arith.constant 0 : index
    %c0_4 = arith.constant 0 : index
    %3 = vector.load %arg1[%c0_2, %c0_3, %c0_4] : memref<1x32x16xf32, #tpu.memory_space<vmem>>, vector<1x32x16xf32>
    %4 = vector.shape_cast %3 : vector<1x32x16xf32> to vector<32x16xf32>
    %5 = arith.truncf %4 : vector<32x16xf32> to vector<32x16xbf16>
    %c0_5 = arith.constant 0 : index
    %c1 = arith.constant 1 : index
    %6 = vector.load %arg9[%c0_5, %c1] : memref<32x18xbf16, #tpu.memory_space<vmem>>, vector<32x16xbf16>
    tpu.vector_store %arg9[%c0_5, %c1], %5 {strides = array<i32>} : memref<32x18xbf16, #tpu.memory_space<vmem>>, vector<32x16xbf16>,
    %c0_6 = arith.constant 0 : index
    %c0_7 = arith.constant 0 : index
    %7 = vector.load %arg9[%c0_6, %c0_7] : memref<32x18xbf16, #tpu.memory_space<vmem>>, vector<32x16xbf16>
    %c0_8 = arith.constant 0 : index
    %c1_9 = arith.constant 1 : index
    %8 = vector.load %arg9[%c0_8, %c1_9] : memref<32x18xbf16, #tpu.memory_space<vmem>>, vector<32x16xbf16>
    %c0_10 = arith.constant 0 : index
    %c2 = arith.constant 2 : index
    %9 = vector.load %arg9[%c0_10, %c2] : memref<32x18xbf16, #tpu.memory_space<vmem>>, vector<32x16xbf16>
    %10 = tpu.concatenate %7, %8, %9 in 0 : vector<32x16xbf16>, vector<32x16xbf16>, vector<32x16xbf16> -> vector<96x16xbf16>
    %c0_11 = arith.constant 0 : index
    %c0_12 = arith.constant 0 : index
    %11 = vector.load %arg2[%c0_11, %c0_12] : memref<32x96xbf16, #tpu.memory_space<vmem>>, vector<32x96xbf16>
    %cst_13 = arith.constant dense<0.000000e+00> : vector<32x16xf32>
    %12 = tpu.matmul %11, %10, %cst_13 {dimension_numbers = #tpu.dot_dimension_numbers<[1], [0], [0], [1], [0, 0, 1, 1], [], []>} : vector<32x96xbf16>, vector<96x16xbf16>, vector<32x16xf32> -> vector<32x16xf32>
    %cst_14 = arith.constant 0.000000e+00 : f32
    %13 = vector.broadcast %cst_14 : f32 to vector<32x16xf32>
    %14 = arith.maximumf %12, %13 : vector<32x16xf32>
    %15 = arith.truncf %14 : vector<32x16xf32> to vector<32x16xbf16>
    %c0_15 = arith.constant 0 : index
    %c1_16 = arith.constant 1 : index
    %16 = vector.load %arg9[%c0_15, %c1_16] : memref<32x18xbf16, #tpu.memory_space<vmem>>, vector<32x16xbf16>
    tpu.vector_store %arg9[%c0_15, %c1_16], %15 {strides = array<i32>} : memref<32x18xbf16, #tpu.memory_space<vmem>>, vector<32x16xbf16>,
    %c0_17 = arith.constant 0 : index
    %c0_18 = arith.constant 0 : index
    %17 = vector.load %arg9[%c0_17, %c0_18] : memref<32x18xbf16, #tpu.memory_space<vmem>>, vector<32x16xbf16>
    %c0_19 = arith.constant 0 : index
    %c1_20 = arith.constant 1 : index
    %18 = vector.load %arg9[%c0_19, %c1_20] : memref<32x18xbf16, #tpu.memory_space<vmem>>, vector<32x16xbf16>
    %c0_21 = arith.constant 0 : index
    %c2_22 = arith.constant 2 : index
    %19 = vector.load %arg9[%c0_21, %c2_22] : memref<32x18xbf16, #tpu.memory_space<vmem>>, vector<32x16xbf16>
    %20 = tpu.concatenate %17, %18, %19 in 0 : vector<32x16xbf16>, vector<32x16xbf16>, vector<32x16xbf16> -> vector<96x16xbf16>
    %c0_23 = arith.constant 0 : index
    %c0_24 = arith.constant 0 : index
    %21 = vector.load %arg3[%c0_23, %c0_24] : memref<32x96xbf16, #tpu.memory_space<vmem>>, vector<32x96xbf16>
    %cst_25 = arith.constant dense<0.000000e+00> : vector<32x16xf32>
    %22 = tpu.matmul %21, %20, %cst_25 {dimension_numbers = #tpu.dot_dimension_numbers<[1], [0], [0], [1], [0, 0, 1, 1], [], []>} : vector<32x96xbf16>, vector<96x16xbf16>, vector<32x16xf32> -> vector<32x16xf32>
    %cst_26 = arith.constant dense<0.000000e+00> : vector<32xf32>
    %23 = vector.multi_reduction <add>, %22, %cst_26 [1] : vector<32x16xf32> to vector<32xf32>
    %24 = vector.shape_cast %23 : vector<32xf32> to vector<32x1xf32>
    %cst_27 = arith.constant 1.600000e+01 : f32
    %25 = vector.broadcast %cst_27 : f32 to vector<32x1xf32>
    %26 = arith.divf %24, %25 : vector<32x1xf32>
    %cst_28 = arith.constant dense<0xFF800000> : vector<32xf32>
    %27 = vector.multi_reduction <maximumf>, %22, %cst_28 [1] : vector<32x16xf32> to vector<32xf32>
    %28 = vector.shape_cast %27 : vector<32xf32> to vector<32x1xf32>
    %c0_29 = arith.constant 0 : index
    %c0_30 = arith.constant 0 : index
    %29 = vector.load %arg4[%c0_29, %c0_30] : memref<2x32xbf16, #tpu.memory_space<vmem>>, vector<2x32xbf16>
    %30 = arith.truncf %26 : vector<32x1xf32> to vector<32x1xbf16>
    %cst_31 = arith.constant dense<0.000000e+00> : vector<2x1xf32>
    %31 = tpu.matmul %29, %30, %cst_31 {dimension_numbers = #tpu.dot_dimension_numbers<[1], [0], [0], [1], [0, 0, 1, 1], [], []>} : vector<2x32xbf16>, vector<32x1xbf16>, vector<2x1xf32> -> vector<2x1xf32>
    %c0_32 = arith.constant 0 : index
    %c0_33 = arith.constant 0 : index
    %32 = vector.load %arg5[%c0_32, %c0_33] : memref<2x1xf32, #tpu.memory_space<vmem>>, vector<2x1xf32>
    %33 = arith.addf %31, %32 : vector<2x1xf32>
    %cst_34 = arith.constant 0.000000e+00 : f32
    %34 = vector.broadcast %cst_34 : f32 to vector<2x1xf32>
    %35 = arith.maximumf %33, %34 : vector<2x1xf32>
    %c0_35 = arith.constant 0 : index
    %c0_36 = arith.constant 0 : index
    %36 = vector.load %arg6[%c0_35, %c0_36] : memref<32x2xbf16, #tpu.memory_space<vmem>>, vector<32x2xbf16>
    %37 = arith.truncf %35 : vector<2x1xf32> to vector<2x1xbf16>
    %cst_37 = arith.constant dense<0.000000e+00> : vector<32x1xf32>
    %38 = tpu.matmul %36, %37, %cst_37 {dimension_numbers = #tpu.dot_dimension_numbers<[1], [0], [0], [1], [0, 0, 1, 1], [], []>} : vector<32x2xbf16>, vector<2x1xbf16>, vector<32x1xf32> -> vector<32x1xf32>
    %c0_38 = arith.constant 0 : index
    %c0_39 = arith.constant 0 : index
    %39 = vector.load %arg7[%c0_38, %c0_39] : memref<32x1xf32, #tpu.memory_space<vmem>>, vector<32x1xf32>
    %40 = arith.addf %38, %39 : vector<32x1xf32>
    %c0_40 = arith.constant 0 : index
    %c0_41 = arith.constant 0 : index
    %41 = vector.load %arg4[%c0_40, %c0_41] : memref<2x32xbf16, #tpu.memory_space<vmem>>, vector<2x32xbf16>
    %42 = arith.truncf %28 : vector<32x1xf32> to vector<32x1xbf16>
    %cst_42 = arith.constant dense<0.000000e+00> : vector<2x1xf32>
    %43 = tpu.matmul %41, %42, %cst_42 {dimension_numbers = #tpu.dot_dimension_numbers<[1], [0], [0], [1], [0, 0, 1, 1], [], []>} : vector<2x32xbf16>, vector<32x1xbf16>, vector<2x1xf32> -> vector<2x1xf32>
    %c0_43 = arith.constant 0 : index
    %c0_44 = arith.constant 0 : index
    %44 = vector.load %arg5[%c0_43, %c0_44] : memref<2x1xf32, #tpu.memory_space<vmem>>, vector<2x1xf32>
    %45 = arith.addf %43, %44 : vector<2x1xf32>
    %cst_45 = arith.constant 0.000000e+00 : f32
    %46 = vector.broadcast %cst_45 : f32 to vector<2x1xf32>
    %47 = arith.maximumf %45, %46 : vector<2x1xf32>
    %c0_46 = arith.constant 0 : index
    %c0_47 = arith.constant 0 : index
    %48 = vector.load %arg6[%c0_46, %c0_47] : memref<32x2xbf16, #tpu.memory_space<vmem>>, vector<32x2xbf16>
    %49 = arith.truncf %47 : vector<2x1xf32> to vector<2x1xbf16>
    %cst_48 = arith.constant dense<0.000000e+00> : vector<32x1xf32>
    %50 = tpu.matmul %48, %49, %cst_48 {dimension_numbers = #tpu.dot_dimension_numbers<[1], [0], [0], [1], [0, 0, 1, 1], [], []>} : vector<32x2xbf16>, vector<2x1xbf16>, vector<32x1xf32> -> vector<32x1xf32>
    %c0_49 = arith.constant 0 : index
    %c0_50 = arith.constant 0 : index
    %51 = vector.load %arg7[%c0_49, %c0_50] : memref<32x1xf32, #tpu.memory_space<vmem>>, vector<32x1xf32>
    %52 = arith.addf %50, %51 : vector<32x1xf32>
    %53 = arith.addf %40, %52 : vector<32x1xf32>
    %cst_51 = arith.constant 0.000000e+00 : f32
    %54 = vector.broadcast %cst_51 : f32 to vector<32x1xf32>
    %55 = arith.subf %54, %53 : vector<32x1xf32>
    %56 = math.exp %55 : vector<32x1xf32>
    %cst_52 = arith.constant 1.000000e+00 : f32
    %57 = vector.broadcast %cst_52 : f32 to vector<32x1xf32>
    %58 = arith.addf %57, %56 : vector<32x1xf32>
    %59 = tpu.reciprocal %58 {approx = true} : vector<32x1xf32> -> vector<32x1xf32>
    %60 = vector.broadcast %59 : vector<32x1xf32> to vector<32x16xf32>
    %61 = arith.mulf %60, %22 : vector<32x16xf32>
    %c0_53 = arith.constant 0 : index
    %c0_54 = arith.constant 0 : index
    %c0_55 = arith.constant 0 : index
    %62 = vector.load %arg1[%c0_53, %c0_54, %c0_55] : memref<1x32x16xf32, #tpu.memory_space<vmem>>, vector<1x32x16xf32>
    %63 = vector.shape_cast %62 : vector<1x32x16xf32> to vector<32x16xf32>
    %64 = arith.addf %61, %63 : vector<32x16xf32>
    %cst_56 = arith.constant 0.000000e+00 : f32
    %65 = vector.broadcast %cst_56 : f32 to vector<32x16xf32>
    %66 = arith.maximumf %64, %65 : vector<32x16xf32>
    %c0_57 = arith.constant 0 : index
    %c0_58 = arith.constant 0 : index
    %c0_59 = arith.constant 0 : index
    %67 = vector.load %arg8[%c0_57, %c0_58, %c0_59] : memref<1x32x16xf32, #tpu.memory_space<vmem>>, vector<1x32x16xf32>
    %68 = vector.shape_cast %67 : vector<1x32x16xf32> to vector<32x16xf32>
    %69 = vector.shape_cast %66 : vector<32x16xf32> to vector<1x32x16xf32>
    tpu.vector_store %arg8[%c0_57, %c0_58, %c0_59], %69 {strides = array<i32>} : memref<1x32x16xf32, #tpu.memory_space<vmem>>, vector<1x32x16xf32>,
    return
  }
  func.func @transform_0(%arg0: i32) -> (i32, i32, i32) {
    %c0_i32 = arith.constant 0 : i32
    %c0_i32_0 = arith.constant 0 : i32
    %c0_i32_1 = arith.constant 0 : i32
    return %arg0, %c0_i32, %c0_i32_0 : i32, i32, i32
  }
  func.func @transform_1(%arg0: i32) -> (i32, i32) {
    %c0_i32 = arith.constant 0 : i32
    %c0_i32_0 = arith.constant 0 : i32
    %c0_i32_1 = arith.constant 0 : i32
    return %c0_i32, %c0_i32_0 : i32, i32
  }
  func.func @transform_2(%arg0: i32) -> (i32, i32) {
    %c0_i32 = arith.constant 0 : i32
    %c0_i32_0 = arith.constant 0 : i32
    %c0_i32_1 = arith.constant 0 : i32
    return %c0_i32, %c0_i32_0 : i32, i32
  }
  func.func @transform_3(%arg0: i32) -> (i32, i32) {
    %c0_i32 = arith.constant 0 : i32
    %c0_i32_0 = arith.constant 0 : i32
    %c0_i32_1 = arith.constant 0 : i32
    return %c0_i32, %c0_i32_0 : i32, i32
  }
  func.func @transform_4(%arg0: i32) -> (i32, i32) {
    %c0_i32 = arith.constant 0 : i32
    %c0_i32_0 = arith.constant 0 : i32
    %c0_i32_1 = arith.constant 0 : i32
    return %c0_i32, %c0_i32_0 : i32, i32
  }
  func.func @transform_5(%arg0: i32) -> (i32, i32) {
    %c0_i32 = arith.constant 0 : i32
    %c0_i32_0 = arith.constant 0 : i32
    %c0_i32_1 = arith.constant 0 : i32
    return %c0_i32, %c0_i32_0 : i32, i32
  }
  func.func @transform_6(%arg0: i32) -> (i32, i32) {
    %c0_i32 = arith.constant 0 : i32
    %c0_i32_0 = arith.constant 0 : i32
    %c0_i32_1 = arith.constant 0 : i32
    return %c0_i32, %c0_i32_0 : i32, i32
  }
  func.func @transform_7(%arg0: i32) -> (i32, i32, i32) {
    %c0_i32 = arith.constant 0 : i32
    %c0_i32_0 = arith.constant 0 : i32
    %c0_i32_1 = arith.constant 0 : i32
    return %arg0, %c0_i32, %c0_i32_0 : i32, i32, i32
  }
}

</mosaic_0001>

<llo_original>
// kernel: tpu_custom_call.1
$region0: #{tpu_custom_call.1}
  #allocation0 [shape = 'u32[]', space=smem, size = 0x4, offset = 0x4, fixed_abs, tag = 'smem constant byte address 0x4 - core index']
  #allocation1 [shape = 'u32[144,128]{1,0:T(1,128)}', space=vmem, size = 0x12000, scoped, tag = 'internal scratch']
  #allocation2 [shape = 'bf16[32,18]{1,0:T(16,128)(2,1)}', space=vmem, size = 0x2000, scoped, tag = 'scratch operand']
  %s0 = inlined_call_operand.vmem [shape: f32[2,32,16], index: 0, kind: input, shape index: {}]
  %s1 = inlined_call_operand.vmem [shape: bf16[32,96], index: 1, kind: input, shape index: {}]
  %s2 = inlined_call_operand.vmem [shape: bf16[32,96], index: 2, kind: input, shape index: {}]
  %s3 = inlined_call_operand.vmem [shape: bf16[2,32], index: 3, kind: input, shape index: {}]
  %s4 = inlined_call_operand.vmem [shape: f32[2,1], index: 4, kind: input, shape index: {}]
  %s5 = inlined_call_operand.vmem [shape: bf16[32,2], index: 5, kind: input, shape index: {}]
  %s6 = inlined_call_operand.vmem [shape: f32[32,1], index: 6, kind: input, shape index: {}]
  %s7 = inlined_call_operand.vmem [shape: f32[2,32,16], index: 7, kind: output, shape index: {}]
  %s8 = sld [smem:[#allocation0]]
  $region61: #{tpu_custom_call.1} parent=0
    _
  %s10 = ssub.s32 1, %s8
  %s11 = scalar_select 0, %s10, %s8
  loop: start=0, step=1, limit=4
  $region2: #{tpu_custom_call.1} parent=0 // loop_pre_header
    _
  $region3: #{tpu_custom_call.1} parent=0 // loop_header
    %s13 = sphi 0, %s17
    %p14 = scmp.ge.s32.totalorder %s13, 4
    %s23 = sphi 0, %s25
    %s26 = sphi 0, %s23
    %s27 = sphi 0, %s26
    %s43 = sphi 0, %s27
    %s47 = sphi 0, %s47
    %s49 = sphi 0, %s47
    %s50 = sphi 0, %s49
    %s64 = sphi 0, %s50
    %s68 = sphi 0, %s68
    %s70 = sphi 0, %s68
    %s71 = sphi 0, %s70
    %s85 = sphi 0, %s71
    %s89 = sphi 0, %s89
    %s91 = sphi 0, %s89
    %s92 = sphi 0, %s91
    %s106 = sphi 0, %s92
    %s110 = sphi 0, %s110
    %s112 = sphi 0, %s110
    %s113 = sphi 0, %s112
    %s127 = sphi 0, %s113
    %s131 = sphi 0, %s131
    %s133 = sphi 0, %s131
    %s134 = sphi 0, %s133
    %s148 = sphi 0, %s134
    %s152 = sphi 0, %s152
    %s154 = sphi 0, %s152
    %s155 = sphi 0, %s154
    %s169 = sphi 0, %s155
    %s175 = sphi 0, %s177
    %s178 = sphi 0, %s175
    %s179 = sphi 0, %s178
    %s195 = sphi 0, %s179
  $region4: #{tpu_custom_call.1} parent=0 // loop_header_branch
    %16 = sbr.rel (%p14) target = $region8
  $region5: #{tpu_custom_call.1} parent=0 // loop_body
    %s18 = ssub.s32 %s13, 1
    %s19 = ssub.s32 %s13, 2
    %s20 = sadd.s32 %s13, 1
    %s21 = ssub.s32 %s13, %s20
    %p22 = scmp.eq.s32.totalorder %s21, 0
    %s24 = sadd.s32 %s23, 1
    %s25 = scalar_select %p22, %s23, %s24
    %p28 = pneg %p22
    %p29 = scmp.eq.s32.totalorder %s13, 1
    %p30 = por %p28, %p29
    %p31 = scmp.ne.s32.totalorder %s23, %s26
    %p32 = scmp.eq.s32.totalorder %s13, 0
    %p33 = por %p31, %p32
    %p34 = scmp.ne.s32.totalorder %s23, %s26
    %p35 = scmp.eq.s32.totalorder %s18, 1
    %p36 = por %p34, %p35
    %p37 = scmp.ne.s32.totalorder %s26, %s27
    %p38 = scmp.eq.s32.totalorder %s18, 0
    %p39 = por %p37, %p38
    %p40 = scmp.ne.s32.totalorder %s26, %s27
    %p41 = scmp.eq.s32.totalorder %s19, 1
    %p42 = por %p40, %p41
    %p44 = scmp.ne.s32.totalorder %s27, %s43
    %p45 = scmp.eq.s32.totalorder %s19, 0
    %p46 = por %p44, %p45
    %s48 = sadd.s32 %s47, 1
    %p51 = scmp.eq.s32.totalorder %s13, 1
    %p52 = scmp.ne.s32.totalorder %s47, %s49
    %p53 = scmp.eq.s32.totalorder %s13, 0
    %p54 = por %p52, %p53
    %p55 = scmp.ne.s32.totalorder %s47, %s49
    %p56 = scmp.eq.s32.totalorder %s18, 1
    %p57 = por %p55, %p56
    %p58 = scmp.ne.s32.totalorder %s49, %s50
    %p59 = scmp.eq.s32.totalorder %s18, 0
    %p60 = por %p58, %p59
    %p61 = scmp.ne.s32.totalorder %s49, %s50
    %p62 = scmp.eq.s32.totalorder %s19, 1
    %p63 = por %p61, %p62
    %p65 = scmp.ne.s32.totalorder %s50, %s64
    %p66 = scmp.eq.s32.totalorder %s19, 0
    %p67 = por %p65, %p66
    %s69 = sadd.s32 %s68, 1
    %p72 = scmp.eq.s32.totalorder %s13, 1
    %p73 = scmp.ne.s32.totalorder %s68, %s70
    %p74 = scmp.eq.s32.totalorder %s13, 0
    %p75 = por %p73, %p74
    %p76 = scmp.ne.s32.totalorder %s68, %s70
    %p77 = scmp.eq.s32.totalorder %s18, 1
    %p78 = por %p76, %p77
    %p79 = scmp.ne.s32.totalorder %s70, %s71
    %p80 = scmp.eq.s32.totalorder %s18, 0
    %p81 = por %p79, %p80
    %p82 = scmp.ne.s32.totalorder %s70, %s71
    %p83 = scmp.eq.s32.totalorder %s19, 1
    %p84 = por %p82, %p83
    %p86 = scmp.ne.s32.totalorder %s71, %s85
    %p87 = scmp.eq.s32.totalorder %s19, 0
    %p88 = por %p86, %p87
    %s90 = sadd.s32 %s89, 1
    %p93 = scmp.eq.s32.totalorder %s13, 1
    %p94 = scmp.ne.s32.totalorder %s89, %s91
    %p95 = scmp.eq.s32.totalorder %s13, 0
    %p96 = por %p94, %p95
    %p97 = scmp.ne.s32.totalorder %s89, %s91
    %p98 = scmp.eq.s32.totalorder %s18, 1
    %p99 = por %p97, %p98
    %p100 = scmp.ne.s32.totalorder %s91, %s92
    %p101 = scmp.eq.s32.totalorder %s18, 0
    %p102 = por %p100, %p101
    %p103 = scmp.ne.s32.totalorder %s91, %s92
    %p104 = scmp.eq.s32.totalorder %s19, 1
    %p105 = por %p103, %p104
    %p107 = scmp.ne.s32.totalorder %s92, %s106
    %p108 = scmp.eq.s32.totalorder %s19, 0
    %p109 = por %p107, %p108
    %s111 = sadd.s32 %s110, 1
    %p114 = scmp.eq.s32.totalorder %s13, 1
    %p115 = scmp.ne.s32.totalorder %s110, %s112
    %p116 = scmp.eq.s32.totalorder %s13, 0
    %p117 = por %p115, %p116
    %p118 = scmp.ne.s32.totalorder %s110, %s112
    %p119 = scmp.eq.s32.totalorder %s18, 1
    %p120 = por %p118, %p119
    %p121 = scmp.ne.s32.totalorder %s112, %s113
    %p122 = scmp.eq.s32.totalorder %s18, 0
    %p123 = por %p121, %p122
    %p124 = scmp.ne.s32.totalorder %s112, %s113
    %p125 = scmp.eq.s32.totalorder %s19, 1
    %p126 = por %p124, %p125
    %p128 = scmp.ne.s32.totalorder %s113, %s127
    %p129 = scmp.eq.s32.totalorder %s19, 0
    %p130 = por %p128, %p129
    %s132 = sadd.s32 %s131, 1
    %p135 = scmp.eq.s32.totalorder %s13, 1
    %p136 = scmp.ne.s32.totalorder %s131, %s133
    %p137 = scmp.eq.s32.totalorder %s13, 0
    %p138 = por %p136, %p137
    %p139 = scmp.ne.s32.totalorder %s131, %s133
    %p140 = scmp.eq.s32.totalorder %s18, 1
    %p141 = por %p139, %p140
    %p142 = scmp.ne.s32.totalorder %s133, %s134
    %p143 = scmp.eq.s32.totalorder %s18, 0
    %p144 = por %p142, %p143
    %p145 = scmp.ne.s32.totalorder %s133, %s134
    %p146 = scmp.eq.s32.totalorder %s19, 1
    %p147 = por %p145, %p146
    %p149 = scmp.ne.s32.totalorder %s134, %s148
    %p150 = scmp.eq.s32.totalorder %s19, 0
    %p151 = por %p149, %p150
    %s153 = sadd.s32 %s152, 1
    %p156 = scmp.eq.s32.totalorder %s13, 1
    %p157 = scmp.ne.s32.totalorder %s152, %s154
    %p158 = scmp.eq.s32.totalorder %s13, 0
    %p159 = por %p157, %p158
    %p160 = scmp.ne.s32.totalorder %s152, %s154
    %p161 = scmp.eq.s32.totalorder %s18, 1
    %p162 = por %p160, %p161
    %p163 = scmp.ne.s32.totalorder %s154, %s155
    %p164 = scmp.eq.s32.totalorder %s18, 0
    %p165 = por %p163, %p164
    %p166 = scmp.ne.s32.totalorder %s154, %s155
    %p167 = scmp.eq.s32.totalorder %s19, 1
    %p168 = por %p166, %p167
    %p170 = scmp.ne.s32.totalorder %s155, %s169
    %p171 = scmp.eq.s32.totalorder %s19, 0
    %p172 = por %p170, %p171
    %s173 = ssub.s32 %s13, %s20
    %p174 = scmp.eq.s32.totalorder %s173, 0
    %s176 = sadd.s32 %s175, 1
    %s177 = scalar_select %p174, %s175, %s176
    %p180 = pneg %p174
    %p181 = scmp.eq.s32.totalorder %s13, 1
    %p182 = por %p180, %p181
    %p183 = scmp.ne.s32.totalorder %s175, %s178
    %p184 = scmp.eq.s32.totalorder %s13, 0
    %p185 = por %p183, %p184
    %p186 = scmp.ne.s32.totalorder %s175, %s178
    %p187 = scmp.eq.s32.totalorder %s18, 1
    %p188 = por %p186, %p187
    %p189 = scmp.ne.s32.totalorder %s178, %s179
    %p190 = scmp.eq.s32.totalorder %s18, 0
    %p191 = por %p189, %p190
    %p192 = scmp.ne.s32.totalorder %s178, %s179
    %p193 = scmp.eq.s32.totalorder %s19, 1
    %p194 = por %p192, %p193
    %p196 = scmp.ne.s32.totalorder %s179, %s195
    %p197 = scmp.eq.s32.totalorder %s19, 0
    %p198 = por %p196, %p197
    %p199 = scmp.le.s32.totalorder 1, %s13
    %p200 = scmp.lt.s32.totalorder %s13, 3
    %p201 = pnand %p199, %p200
    %p202 = pneg %p201
    // Predicated region
    $region9: #{tpu_custom_call.1} parent=5 // pred_check
      _
    $region10: #{tpu_custom_call.1} parent=5 // pred_check_branch
      %204 = sbr.rel (%p201) target = $region12
    $region11: #{tpu_custom_call.1} parent=5 // pred_region
      %s205 = ssub.s32 %s13, 1
      // Predicated region
      $region13: #{tpu_custom_call.1} parent=11 // pred_check
        %p206 = pneg %p60
      $region14: #{tpu_custom_call.1} parent=11 // pred_check_branch
        %208 = sbr.rel (%p206) target = $region16
      $region15: #{tpu_custom_call.1} parent=11 // pred_region
        _
      $region16: #{tpu_custom_call.1} parent=11 // pred_fallthru
        _
      // Predicated region
      $region17: #{tpu_custom_call.1} parent=11 // pred_check
        %p209 = pneg %p81
      $region18: #{tpu_custom_call.1} parent=11 // pred_check_branch
        %211 = sbr.rel (%p209) target = $region20
      $region19: #{tpu_custom_call.1} parent=11 // pred_region
        _
      $region20: #{tpu_custom_call.1} parent=11 // pred_fallthru
        _
      // Predicated region
      $region21: #{tpu_custom_call.1} parent=11 // pred_check
        %p212 = pneg %p102
      $region22: #{tpu_custom_call.1} parent=11 // pred_check_branch
        %214 = sbr.rel (%p212) target = $region24
      $region23: #{tpu_custom_call.1} parent=11 // pred_region
        _
      $region24: #{tpu_custom_call.1} parent=11 // pred_fallthru
        _
      // Predicated region
      $region25: #{tpu_custom_call.1} parent=11 // pred_check
        %p215 = pneg %p123
      $region26: #{tpu_custom_call.1} parent=11 // pred_check_branch
        %217 = sbr.rel (%p215) target = $region28
      $region27: #{tpu_custom_call.1} parent=11 // pred_region
        _
      $region28: #{tpu_custom_call.1} parent=11 // pred_fallthru
        _
      // Predicated region
      $region29: #{tpu_custom_call.1} parent=11 // pred_check
        %p218 = pneg %p144
      $region30: #{tpu_custom_call.1} parent=11 // pred_check_branch
        %220 = sbr.rel (%p218) target = $region32
      $region31: #{tpu_custom_call.1} parent=11 // pred_region
        _
      $region32: #{tpu_custom_call.1} parent=11 // pred_fallthru
        _
      // Predicated region
      $region33: #{tpu_custom_call.1} parent=11 // pred_check
        %p221 = pneg %p165
      $region34: #{tpu_custom_call.1} parent=11 // pred_check_branch
        %223 = sbr.rel (%p221) target = $region36
      $region35: #{tpu_custom_call.1} parent=11 // pred_region
        _
      $region36: #{tpu_custom_call.1} parent=11 // pred_fallthru
        _
    $region12: #{tpu_custom_call.1} parent=5 // pred_fallthru
      _
    %p224 = scmp.lt.s32.totalorder %s13, 2
    // Predicated region
    $region37: #{tpu_custom_call.1} parent=5 // pred_check
      %p225 = pneg %p224
    $region38: #{tpu_custom_call.1} parent=5 // pred_check_branch
      %227 = sbr.rel (%p225) target = $region40
    $region39: #{tpu_custom_call.1} parent=5 // pred_region
      // Predicated region
      $region41: #{tpu_custom_call.1} parent=39 // pred_check
        %p228 = pneg %p33
      $region42: #{tpu_custom_call.1} parent=39 // pred_check_branch
        %230 = sbr.rel (%p228) target = $region44
      $region43: #{tpu_custom_call.1} parent=39 // pred_region
        %p231 = scmp.lt.s32.totalorder %s13, 1
        %s232 = scalar_select %p231, %s13, 1
        %s233 = smul.addr %s232, 4
        %s234 = smul.addr %s233, 8
        %s235 = scalar_lea.vmem %s0, %s234
      $region44: #{tpu_custom_call.1} parent=39 // pred_fallthru
        _
    $region40: #{tpu_custom_call.1} parent=5 // pred_fallthru
      _
    %p236 = scmp.le.s32.totalorder 1, %s13
    %p237 = scmp.lt.s32.totalorder %s13, 3
    %p238 = pnand %p236, %p237
    %p239 = pneg %p238
    // Predicated region
    $region45: #{tpu_custom_call.1} parent=5 // pred_check
      _
    $region46: #{tpu_custom_call.1} parent=5 // pred_check_branch
      %241 = sbr.rel (%p238) target = $region48
    $region47: #{tpu_custom_call.1} parent=5 // pred_region
      %s242 = ssub.s32 %s13, 1
      %p243 = scmp.lt.s32.totalorder %s18, 1
      %s244 = scalar_select %p243, %s18, 1
      %s245 = smul.addr %s244, 4
      %s246 = smul.addr %s245, 8
      %s247 = scalar_lea.vmem %s0, %s246
      %p248 = pneg %p39
      %p249 = pneg %p36
      %p250 = pneg %p60
      %p251 = pneg %p57
      %p252 = pneg %p81
      %p253 = pneg %p78
      %p254 = pneg %p102
      %p255 = pneg %p99
      %p256 = pneg %p123
      %p257 = pneg %p120
      %p258 = pneg %p144
      %p259 = pneg %p141
      %p260 = pneg %p165
      %p261 = pneg %p162
      %p262 = pneg %p191
      %p263 = pneg %p188
      %p264 = scmp.lt.s32.totalorder %s18, 1
      %s265 = scalar_select %p264, %s18, 1
      %s266 = smul.addr %s265, 4
      %s267 = smul.addr %s266, 8
      %s268 = scalar_lea.vmem %s7, %s267
      %p269 = scmp.lt.s32.totalorder %s18, 1
      %s270 = scalar_select %p269, %s18, 1
      %s271 = smul.addr %s270, 4
      %s272 = smul.addr %s271, 8
      %s273 = scalar_lea.vmem %s0, %s272
      %p274 = scmp.lt.s32.totalorder %s18, 1
      %s275 = scalar_select %p274, %s18, 1
      %s276 = smul.addr %s275, 4
      %s277 = smul.addr %s276, 8
      %s278 = scalar_lea.vmem %s7, %s277
      %vm280 = vcmask 7168
      %281 = vst.msk [vmem:[#allocation2] sm:$0xff] %vm280, 0
      %282 = vst.msk [vmem:[#allocation2 + $0x8] sm:$0xff] %vm280, 0
      %vm283 = vcmask 146568
      %284 = vst.msk [vmem:[#allocation2] sm:$0xff] %vm283, 0
      %285 = vst.msk [vmem:[#allocation2 + $0x8] sm:$0xff] %vm283, 0
      %v286 = vld [vmem:[%s273] sm:$0xff]
      %v287 = vld [vmem:[%s273 + $0x8] sm:$0xff]
      %v288 = vld [vmem:[%s273 + $0x10] sm:$0xff]
      %v289 = vld [vmem:[%s273 + $0x18] sm:$0xff]
      %v290 = vpack.c.bf16 %v287, %v286
      %v291 = vpack.c.bf16 %v289, %v288
      %294 = vrot.lane.b32.xlu0 %v290, 1
      %v295 = vpop.permute.xlu0 %294
      %296 = vrot.lane.b32.xlu0 %v291, 1
      %v297 = vpop.permute.xlu0 %296
      %vm300 = vcmask 138248
      %301 = vst.msk [vmem:[#allocation2] sm:$0xff] %vm300, %v295
      %302 = vst.msk [vmem:[#allocation2 + $0x8] sm:$0xff] %vm300, %v297
      %v303 = vld [vmem:[#allocation2] sm:$0xff]
      %v304 = vld [vmem:[#allocation2 + $0x8] sm:$0xff]
      %307 = vrot.lane.b32.xlu0 %v303, 127
      %v308 = vpop.permute.xlu0 %307
      %309 = vrot.lane.b32.xlu0 %v304, 127
      %v310 = vpop.permute.xlu0 %309
      %313 = vrot.lane.b32.xlu0 %v303, 126
      %v314 = vpop.permute.xlu0 %313
      %315 = vrot.lane.b32.xlu0 %v304, 126
      %v316 = vpop.permute.xlu0 %315
      %v319 = vld [vmem:[%s1] sm:$0xf]
      %v320 = vld [vmem:[%s1 + $0x4] sm:$0xf]
      %v321 = vld [vmem:[%s1 + $0x8] sm:$0xf]
      %v322 = vld [vmem:[%s1 + $0xc] sm:$0xf]
      %v327 = vunpack.c.l.b16 %v319
      %v328 = vunpack.c.l.b16 %v320
      %v329 = vunpack.c.l.b16 %v321
      %v330 = vunpack.c.l.b16 %v322
      %v331 = vpack.c.b16 %v328, %v327
      %v332 = vpack.c.b16 %v330, %v329
      %vm333 = vcmask 785408
      %v335 = vsel %vm333, %v331, 0
      %v338 = vsel %vm333, %v332, 0
      %340 = vmatprep.subr.bf16.mxu0 0
      %341 = vmatpush1.bf16.msra.mxu0 %v303
      %342 = vmatprep.subr.bf16.mxu0 0
      %343 = vmatpush1.bf16.msra.mxu0 %v304
      %344 = vmatprep.subr.bf16.mxu0 0
      %345 = vmatpush1.bf16.msra.mxu0 %v308
      %346 = vmatprep.subr.bf16.mxu0 0
      %347 = vmatpush1.bf16.msra.mxu0 %v310
      %348 = vmatprep.subr.bf16.mxu0 0
      %349 = vmatpush1.bf16.msra.mxu0 %v314
      %350 = vmatprep.subr.bf16.mxu0 0
      %351 = vmatpush1.bf16.msra.mxu0 %v316
      %352 = vmatprep.subr.bf16.mxu0 0
      %353 = vmatpush1.bf16.msra.mxu0 0
      %354 = vmatprep.subr.bf16.mxu0 0
      %355 = vmatpush1.bf16.msra.mxu0 0
      %356 = vmatprep.subr.bf16.mxu0 0
      %357 = vmatpush1.bf16.msra.mxu0 0
      %358 = vmatprep.subr.bf16.mxu0 0
      %359 = vmatpush1.bf16.msra.mxu0 0
      %360 = vmatprep.subr.bf16.mxu0 0
      %361 = vmatpush1.bf16.msra.mxu0 0
      %362 = vmatprep.subr.bf16.mxu0 0
      %363 = vmatpush1.bf16.msra.mxu0 0
      %364 = vmatprep.subr.bf16.mxu0 0
      %365 = vmatpush1.bf16.msra.mxu0 0
      %366 = vmatprep.subr.bf16.mxu0 0
      %367 = vmatpush1.bf16.msra.mxu0 0
      %368 = vmatprep.subr.bf16.mxu0 0
      %369 = vmatpush1.bf16.msra.mxu0 0
      %370 = vmatprep.subr.bf16.mxu0 0
      %371 = vmatpush1.bf16.msra.mxu0 0
      %372 = vmatprep.mubr.bf16.mxu0 0
      %373 = vmatmul.mubr.bf16.gmra.mrb[0].mxu0 %v335
      %v374 = vpop.f32.mrb[0].mxu0
      %v375 = vadd.f32 0.0, %v374
      %v376 = vpop.f32.mrb[0].mxu0
      %v377 = vpop.f32.mrb[0].mxu0
      %v378 = vadd.f32 0.0, %v377
      %v379 = vpop.f32.mrb[0].mxu0
      %380 = vmatprep.mubr.bf16.mxu0 0
      %381 = vmatmul.mubr.bf16.gmra.mrb[0].mxu0 %v338
      %v382 = vpop.f32.mrb[0].mxu0
      %v383 = vadd.f32 0.0, %v382
      %v384 = vpop.f32.mrb[0].mxu0
      %v385 = vpop.f32.mrb[0].mxu0
      %v386 = vadd.f32 0.0, %v385
      %v387 = vpop.f32.mrb[0].mxu0
      %388 = vdwg.mxu0
      %v389 = vmax.f32 %v375, 0.0
      %v390 = vmax.f32 %v378, 0.0
      %v391 = vmax.f32 %v383, 0.0
      %v392 = vmax.f32 %v386, 0.0
      %v393 = vpack.c.bf16 %v390, %v389
      %v394 = vpack.c.bf16 %v392, %v391
      %397 = vrot.lane.b32.xlu0 %v393, 1
      %v398 = vpop.permute.xlu0 %397
      %399 = vrot.lane.b32.xlu0 %v394, 1
      %v400 = vpop.permute.xlu0 %399
      %403 = vst.msk [vmem:[#allocation2] sm:$0xff] %vm300, %v398
      %404 = vst.msk [vmem:[#allocation2 + $0x8] sm:$0xff] %vm300, %v400
      %v405 = vld [vmem:[#allocation2] sm:$0xff]
      %v406 = vld [vmem:[#allocation2 + $0x8] sm:$0xff]
      %409 = vrot.lane.b32.xlu0 %v405, 127
      %v410 = vpop.permute.xlu0 %409
      %411 = vrot.lane.b32.xlu0 %v406, 127
      %v412 = vpop.permute.xlu0 %411
      %415 = vrot.lane.b32.xlu0 %v405, 126
      %v416 = vpop.permute.xlu0 %415
      %417 = vrot.lane.b32.xlu0 %v406, 126
      %v418 = vpop.permute.xlu0 %417
      %v421 = vld [vmem:[%s2] sm:$0xf]
      %v422 = vld [vmem:[%s2 + $0x4] sm:$0xf]
      %v423 = vld [vmem:[%s2 + $0x8] sm:$0xf]
      %v424 = vld [vmem:[%s2 + $0xc] sm:$0xf]
      %v429 = vunpack.c.l.b16 %v421
      %v430 = vunpack.c.l.b16 %v422
      %v431 = vunpack.c.l.b16 %v423
      %v432 = vunpack.c.l.b16 %v424
      %v433 = vpack.c.b16 %v430, %v429
      %v434 = vpack.c.b16 %v432, %v431
      %v436 = vsel %vm333, %v433, 0
      %v439 = vsel %vm333, %v434, 0
      %441 = vmatprep.subr.bf16.mxu0 0
      %442 = vmatpush1.bf16.msra.mxu0 %v405
      %443 = vmatprep.subr.bf16.mxu0 0
      %444 = vmatpush1.bf16.msra.mxu0 %v406
      %445 = vmatprep.subr.bf16.mxu0 0
      %446 = vmatpush1.bf16.msra.mxu0 %v410
      %447 = vmatprep.subr.bf16.mxu0 0
      %448 = vmatpush1.bf16.msra.mxu0 %v412
      %449 = vmatprep.subr.bf16.mxu0 0
      %450 = vmatpush1.bf16.msra.mxu0 %v416
      %451 = vmatprep.subr.bf16.mxu0 0
      %452 = vmatpush1.bf16.msra.mxu0 %v418
      %453 = vmatprep.subr.bf16.mxu0 0
      %454 = vmatpush1.bf16.msra.mxu0 0
      %455 = vmatprep.subr.bf16.mxu0 0
      %456 = vmatpush1.bf16.msra.mxu0 0
      %457 = vmatprep.subr.bf16.mxu0 0
      %458 = vmatpush1.bf16.msra.mxu0 0
      %459 = vmatprep.subr.bf16.mxu0 0
      %460 = vmatpush1.bf16.msra.mxu0 0
      %461 = vmatprep.subr.bf16.mxu0 0
      %462 = vmatpush1.bf16.msra.mxu0 0
      %463 = vmatprep.subr.bf16.mxu0 0
      %464 = vmatpush1.bf16.msra.mxu0 0
      %465 = vmatprep.subr.bf16.mxu0 0
      %466 = vmatpush1.bf16.msra.mxu0 0
      %467 = vmatprep.subr.bf16.mxu0 0
      %468 = vmatpush1.bf16.msra.mxu0 0
      %469 = vmatprep.subr.bf16.mxu0 0
      %470 = vmatpush1.bf16.msra.mxu0 0
      %471 = vmatprep.subr.bf16.mxu0 0
      %472 = vmatpush1.bf16.msra.mxu0 0
      %473 = vmatprep.mubr.bf16.mxu0 0
      %474 = vmatmul.mubr.bf16.gmra.mrb[0].mxu0 %v436
      %v475 = vpop.f32.mrb[0].mxu0
      %v476 = vadd.f32 0.0, %v475
      %v477 = vpop.f32.mrb[0].mxu0
      %v478 = vpop.f32.mrb[0].mxu0
      %v479 = vadd.f32 0.0, %v478
      %v480 = vpop.f32.mrb[0].mxu0
      %481 = vmatprep.mubr.bf16.mxu0 0
      %482 = vmatmul.mubr.bf16.gmra.mrb[0].mxu0 %v439
      %v483 = vpop.f32.mrb[0].mxu0
      %v484 = vadd.f32 0.0, %v483
      %v485 = vpop.f32.mrb[0].mxu0
      %v486 = vpop.f32.mrb[0].mxu0
      %v487 = vadd.f32 0.0, %v486
      %v488 = vpop.f32.mrb[0].mxu0
      %489 = vdwg.mxu0
      %vm490 = vcmask 130048
      %v491 = vsel %vm490, %v476, 0.0
      %492 = vadd.xlane.f32.xlu0 %v491
      %v493 = vpop.xlane.xlu0 %492
      %v494 = vsel %vm490, %v479, 0.0
      %495 = vadd.xlane.f32.xlu0 %v494
      %v496 = vpop.xlane.xlu0 %495
      %v497 = vsel %vm490, %v484, 0.0
      %498 = vadd.xlane.f32.xlu0 %v497
      %v499 = vpop.xlane.xlu0 %498
      %v500 = vsel %vm490, %v487, 0.0
      %501 = vadd.xlane.f32.xlu0 %v500
      %v502 = vpop.xlane.xlu0 %501
      %v503 = vrcp.pop 16.0
      %v504 = vmul.f32 %v493, %v503
      %v505 = vmul.f32 %v496, %v503
      %v506 = vmul.f32 %v499, %v503
      %v507 = vmul.f32 %v502, %v503
      %v508 = vsel %vm490, %v476, -inf
      %509 = vmax.xlane.f32.xlu0 %v508
      %v510 = vpop.xlane.xlu0 %509
      %v511 = vsel %vm490, %v479, -inf
      %512 = vmax.xlane.f32.xlu0 %v511
      %v513 = vpop.xlane.xlu0 %512
      %v514 = vsel %vm490, %v484, -inf
      %515 = vmax.xlane.f32.xlu0 %v514
      %v516 = vpop.xlane.xlu0 %515
      %v517 = vsel %vm490, %v487, -inf
      %518 = vmax.xlane.f32.xlu0 %v517
      %v519 = vpop.xlane.xlu0 %518
      %v520 = vld [vmem:[%s3] sm:$0x1]
      %v521 = vpack.c.bf16 %v505, %v504
      %v522 = vpack.c.bf16 %v507, %v506
      %v523 = vld [vmem:[%s4] sm:$0x3]
      %vm524 = vcmask 261120
      %v526 = vsel %vm524, %v520, 0
      %528 = vmatprep.subr.bf16.mxu0 0
      %529 = vmatpush1.bf16.msra.mxu0 %v521
      %530 = vmatprep.subr.bf16.mxu0 0
      %531 = vmatpush1.bf16.msra.mxu0 %v522
      %532 = vmatprep.subr.bf16.mxu0 0
      %533 = vmatpush1.bf16.msra.mxu0 0
      %534 = vmatprep.subr.bf16.mxu0 0
      %535 = vmatpush1.bf16.msra.mxu0 0
      %536 = vmatprep.subr.bf16.mxu0 0
      %537 = vmatpush1.bf16.msra.mxu0 0
      %538 = vmatprep.subr.bf16.mxu0 0
      %539 = vmatpush1.bf16.msra.mxu0 0
      %540 = vmatprep.subr.bf16.mxu0 0
      %541 = vmatpush1.bf16.msra.mxu0 0
      %542 = vmatprep.subr.bf16.mxu0 0
      %543 = vmatpush1.bf16.msra.mxu0 0
      %544 = vmatprep.subr.bf16.mxu0 0
      %545 = vmatpush1.bf16.msra.mxu0 0
      %546 = vmatprep.subr.bf16.mxu0 0
      %547 = vmatpush1.bf16.msra.mxu0 0
      %548 = vmatprep.subr.bf16.mxu0 0
      %549 = vmatpush1.bf16.msra.mxu0 0
      %550 = vmatprep.subr.bf16.mxu0 0
      %551 = vmatpush1.bf16.msra.mxu0 0
      %552 = vmatprep.subr.bf16.mxu0 0
      %553 = vmatpush1.bf16.msra.mxu0 0
      %554 = vmatprep.subr.bf16.mxu0 0
      %555 = vmatpush1.bf16.msra.mxu0 0
      %556 = vmatprep.subr.bf16.mxu0 0
      %557 = vmatpush1.bf16.msra.mxu0 0
      %558 = vmatprep.subr.bf16.mxu0 0
      %559 = vmatpush1.bf16.msra.mxu0 0
      %560 = vmatprep.mubr.bf16.mxu0 0
      %561 = vmatmul.mubr.bf16.gmra.mrb[0].mxu0 %v526
      %v562 = vpop.f32.mrb[0].mxu0
      %v563 = vadd.f32 %v523, %v562
      %v564 = vpop.f32.mrb[0].mxu0
      %v565 = vpop.f32.mrb[0].mxu0
      %v566 = vpop.f32.mrb[0].mxu0
      %567 = vdwg.mxu0
      %v568 = vmax.f32 %v563, 0.0
      %v569 = vld [vmem:[%s5] sm:$0xf]
      %v570 = vld [vmem:[%s5 + $0x4] sm:$0xf]
      %v571 = vld [vmem:[%s5 + $0x8] sm:$0xf]
      %v572 = vld [vmem:[%s5 + $0xc] sm:$0xf]
      %v573 = vpack.c.bf16 %v568, %v568
      %v574 = vld [vmem:[%s6] sm:$0xff]
      %v575 = vld [vmem:[%s6 + $0x8] sm:$0xff]
      %v576 = vld [vmem:[%s6 + $0x10] sm:$0xff]
      %v577 = vld [vmem:[%s6 + $0x18] sm:$0xff]
      %v582 = vunpack.c.l.b16 %v569
      %v583 = vunpack.c.l.b16 %v570
      %v584 = vunpack.c.l.b16 %v571
      %v585 = vunpack.c.l.b16 %v572
      %v586 = vpack.c.b16 %v583, %v582
      %v587 = vpack.c.b16 %v585, %v584
      %vm588 = vcmask 15360
      %v590 = vsel %vm588, %v586, 0
      %v593 = vsel %vm588, %v587, 0
      %vm595 = vcmask 1040384
      %v597 = vsel %vm595, %v573, 0
      %599 = vmatprep.subr.bf16.mxu0 0
      %600 = vmatpush1.bf16.msra.mxu0 %v597
      %601 = vmatprep.subr.bf16.mxu0 0
      %602 = vmatpush1.bf16.msra.mxu0 0
      %603 = vmatprep.subr.bf16.mxu0 0
      %604 = vmatpush1.bf16.msra.mxu0 0
      %605 = vmatprep.subr.bf16.mxu0 0
      %606 = vmatpush1.bf16.msra.mxu0 0
      %607 = vmatprep.subr.bf16.mxu0 0
      %608 = vmatpush1.bf16.msra.mxu0 0
      %609 = vmatprep.subr.bf16.mxu0 0
      %610 = vmatpush1.bf16.msra.mxu0 0
      %611 = vmatprep.subr.bf16.mxu0 0
      %612 = vmatpush1.bf16.msra.mxu0 0
      %613 = vmatprep.subr.bf16.mxu0 0
      %614 = vmatpush1.bf16.msra.mxu0 0
      %615 = vmatprep.subr.bf16.mxu0 0
      %616 = vmatpush1.bf16.msra.mxu0 0
      %617 = vmatprep.subr.bf16.mxu0 0
      %618 = vmatpush1.bf16.msra.mxu0 0
      %619 = vmatprep.subr.bf16.mxu0 0
      %620 = vmatpush1.bf16.msra.mxu0 0
      %621 = vmatprep.subr.bf16.mxu0 0
      %622 = vmatpush1.bf16.msra.mxu0 0
      %623 = vmatprep.subr.bf16.mxu0 0
      %624 = vmatpush1.bf16.msra.mxu0 0
      %625 = vmatprep.subr.bf16.mxu0 0
      %626 = vmatpush1.bf16.msra.mxu0 0
      %627 = vmatprep.subr.bf16.mxu0 0
      %628 = vmatpush1.bf16.msra.mxu0 0
      %629 = vmatprep.subr.bf16.mxu0 0
      %630 = vmatpush1.bf16.msra.mxu0 0
      %631 = vmatprep.mubr.bf16.mxu0 0
      %632 = vmatmul.mubr.bf16.gmra.mrb[0].mxu0 %v590
      %v633 = vpop.f32.mrb[0].mxu0
      %v634 = vadd.f32 %v574, %v633
      %v635 = vpop.f32.mrb[0].mxu0
      %v636 = vpop.f32.mrb[0].mxu0
      %v637 = vadd.f32 %v575, %v636
      %v638 = vpop.f32.mrb[0].mxu0
      %639 = vmatprep.mubr.bf16.mxu0 0
      %640 = vmatmul.mubr.bf16.gmra.mrb[0].mxu0 %v593
      %v641 = vpop.f32.mrb[0].mxu0
      %v642 = vadd.f32 %v576, %v641
      %v643 = vpop.f32.mrb[0].mxu0
      %v644 = vpop.f32.mrb[0].mxu0
      %v645 = vadd.f32 %v577, %v644
      %v646 = vpop.f32.mrb[0].mxu0
      %647 = vdwg.mxu0
      %v648 = vpack.c.bf16 %v513, %v510
      %v649 = vpack.c.bf16 %v519, %v516
      %650 = vmatprep.subr.bf16.mxu0 0
      %651 = vmatpush1.bf16.msra.mxu0 %v648
      %652 = vmatprep.subr.bf16.mxu0 0
      %653 = vmatpush1.bf16.msra.mxu0 %v649
      %654 = vmatprep.subr.bf16.mxu0 0
      %655 = vmatpush1.bf16.msra.mxu0 0
      %656 = vmatprep.subr.bf16.mxu0 0
      %657 = vmatpush1.bf16.msra.mxu0 0
      %658 = vmatprep.subr.bf16.mxu0 0
      %659 = vmatpush1.bf16.msra.mxu0 0
      %660 = vmatprep.subr.bf16.mxu0 0
      %661 = vmatpush1.bf16.msra.mxu0 0
      %662 = vmatprep.subr.bf16.mxu0 0
      %663 = vmatpush1.bf16.msra.mxu0 0
      %664 = vmatprep.subr.bf16.mxu0 0
      %665 = vmatpush1.bf16.msra.mxu0 0
      %666 = vmatprep.subr.bf16.mxu0 0
      %667 = vmatpush1.bf16.msra.mxu0 0
      %668 = vmatprep.subr.bf16.mxu0 0
      %669 = vmatpush1.bf16.msra.mxu0 0
      %670 = vmatprep.subr.bf16.mxu0 0
      %671 = vmatpush1.bf16.msra.mxu0 0
      %672 = vmatprep.subr.bf16.mxu0 0
      %673 = vmatpush1.bf16.msra.mxu0 0
      %674 = vmatprep.subr.bf16.mxu0 0
      %675 = vmatpush1.bf16.msra.mxu0 0
      %676 = vmatprep.subr.bf16.mxu0 0
      %677 = vmatpush1.bf16.msra.mxu0 0
      %678 = vmatprep.subr.bf16.mxu0 0
      %679 = vmatpush1.bf16.msra.mxu0 0
      %680 = vmatprep.subr.bf16.mxu0 0
      %681 = vmatpush1.bf16.msra.mxu0 0
      %682 = vmatprep.mubr.bf16.mxu0 0
      %683 = vmatmul.mubr.bf16.gmra.mrb[0].mxu0 %v526
      %v684 = vpop.f32.mrb[0].mxu0
      %v685 = vadd.f32 %v523, %v684
      %v686 = vpop.f32.mrb[0].mxu0
      %v687 = vpop.f32.mrb[0].mxu0
      %v688 = vpop.f32.mrb[0].mxu0
      %689 = vdwg.mxu0
      %v690 = vmax.f32 %v685, 0.0
      %v691 = vpack.c.bf16 %v690, %v690
      %v693 = vsel %vm595, %v691, 0
      %695 = vmatprep.subr.bf16.mxu0 0
      %696 = vmatpush1.bf16.msra.mxu0 %v693
      %697 = vmatprep.subr.bf16.mxu0 0
      %698 = vmatpush1.bf16.msra.mxu0 0
      %699 = vmatprep.subr.bf16.mxu0 0
      %700 = vmatpush1.bf16.msra.mxu0 0
      %701 = vmatprep.subr.bf16.mxu0 0
      %702 = vmatpush1.bf16.msra.mxu0 0
      %703 = vmatprep.subr.bf16.mxu0 0
      %704 = vmatpush1.bf16.msra.mxu0 0
      %705 = vmatprep.subr.bf16.mxu0 0
      %706 = vmatpush1.bf16.msra.mxu0 0
      %707 = vmatprep.subr.bf16.mxu0 0
      %708 = vmatpush1.bf16.msra.mxu0 0
      %709 = vmatprep.subr.bf16.mxu0 0
      %710 = vmatpush1.bf16.msra.mxu0 0
      %711 = vmatprep.subr.bf16.mxu0 0
      %712 = vmatpush1.bf16.msra.mxu0 0
      %713 = vmatprep.subr.bf16.mxu0 0
      %714 = vmatpush1.bf16.msra.mxu0 0
      %715 = vmatprep.subr.bf16.mxu0 0
      %716 = vmatpush1.bf16.msra.mxu0 0
      %717 = vmatprep.subr.bf16.mxu0 0
      %718 = vmatpush1.bf16.msra.mxu0 0
      %719 = vmatprep.subr.bf16.mxu0 0
      %720 = vmatpush1.bf16.msra.mxu0 0
      %721 = vmatprep.subr.bf16.mxu0 0
      %722 = vmatpush1.bf16.msra.mxu0 0
      %723 = vmatprep.subr.bf16.mxu0 0
      %724 = vmatpush1.bf16.msra.mxu0 0
      %725 = vmatprep.subr.bf16.mxu0 0
      %726 = vmatpush1.bf16.msra.mxu0 0
      %727 = vmatprep.mubr.bf16.mxu0 0
      %728 = vmatmul.mubr.bf16.gmra.mrb[0].mxu0 %v590
      %v729 = vpop.f32.mrb[0].mxu0
      %v730 = vadd.f32 %v574, %v729
      %v731 = vpop.f32.mrb[0].mxu0
      %v732 = vpop.f32.mrb[0].mxu0
      %v733 = vadd.f32 %v575, %v732
      %v734 = vpop.f32.mrb[0].mxu0
      %735 = vmatprep.mubr.bf16.mxu0 0
      %736 = vmatmul.mubr.bf16.gmra.mrb[0].mxu0 %v593
      %v737 = vpop.f32.mrb[0].mxu0
      %v738 = vadd.f32 %v576, %v737
      %v739 = vpop.f32.mrb[0].mxu0
      %v740 = vpop.f32.mrb[0].mxu0
      %v741 = vadd.f32 %v577, %v740
      %v742 = vpop.f32.mrb[0].mxu0
      %743 = vdwg.mxu0
      %v744 = vadd.f32 %v634, %v730
      %v745 = vadd.f32 %v637, %v733
      %v746 = vadd.f32 %v642, %v738
      %v747 = vadd.f32 %v645, %v741
      %v748 = vsub.f32 0.0, %v744
      %v749 = vsub.f32 0.0, %v745
      %v750 = vsub.f32 0.0, %v746
      %v751 = vsub.f32 0.0, %v747
      %v752 = vmul.f32 %v748, 1.442695
      %v753 = vpow.pop %v752
      %v754 = vmul.f32 %v749, 1.442695
      %v755 = vpow.pop %v754
      %v756 = vmul.f32 %v750, 1.442695
      %v757 = vpow.pop %v756
      %v758 = vmul.f32 %v751, 1.442695
      %v759 = vpow.pop %v758
      %v760 = vadd.f32 %v753, 1.0
      %v761 = vadd.f32 %v755, 1.0
      %v762 = vadd.f32 %v757, 1.0
      %v763 = vadd.f32 %v759, 1.0
      %v764 = vrcp.pop %v760
      %v765 = vrcp.pop %v761
      %v766 = vrcp.pop %v762
      %v767 = vrcp.pop %v763
      %769 = vset.pattern.permute.xlu0 0
      %770 = vperm.xlu0 %769, %v764
      %v771 = vpop.permute.xlu0 %770
      %774 = vset.pattern.permute.xlu0 0
      %775 = vperm.xlu0 %774, %v765
      %v776 = vpop.permute.xlu0 %775
      %779 = vset.pattern.permute.xlu0 0
      %780 = vperm.xlu0 %779, %v766
      %v781 = vpop.permute.xlu0 %780
      %784 = vset.pattern.permute.xlu0 0
      %785 = vperm.xlu0 %784, %v767
      %v786 = vpop.permute.xlu0 %785
      %v788 = vmul.f32 %v771, %v476
      %v789 = vmul.f32 %v776, %v479
      %v790 = vmul.f32 %v781, %v484
      %v791 = vmul.f32 %v786, %v487
      %v792 = vld [vmem:[%s273] sm:$0xff]
      %v793 = vld [vmem:[%s273 + $0x8] sm:$0xff]
      %v794 = vld [vmem:[%s273 + $0x10] sm:$0xff]
      %v795 = vld [vmem:[%s273 + $0x18] sm:$0xff]
      %v796 = vadd.f32 %v788, %v792
      %v797 = vadd.f32 %v789, %v793
      %v798 = vadd.f32 %v790, %v794
      %v799 = vadd.f32 %v791, %v795
      %v800 = vmax.f32 %v796, 0.0
      %v801 = vmax.f32 %v797, 0.0
      %v802 = vmax.f32 %v798, 0.0
      %v803 = vmax.f32 %v799, 0.0
      %804 = vst.msk [vmem:[%s278] sm:$0xff] %vm490, %v800
      %805 = vst.msk [vmem:[%s278 + $0x8] sm:$0xff] %vm490, %v801
      %806 = vst.msk [vmem:[%s278 + $0x10] sm:$0xff] %vm490, %v802
      %807 = vst.msk [vmem:[%s278 + $0x18] sm:$0xff] %vm490, %v803
      %p808 = scmp.lt.s32.totalorder %s18, 1
      %s809 = scalar_select %p808, %s18, 1
      %s810 = smul.addr %s809, 4
      %s811 = smul.addr %s810, 8
      %s812 = scalar_lea.vmem %s7, %s811
      // Predicated region
      $region49: #{tpu_custom_call.1} parent=47 // pred_check
        %p813 = pneg %p188
      $region50: #{tpu_custom_call.1} parent=47 // pred_check_branch
        %815 = sbr.rel (%p813) target = $region52
      $region51: #{tpu_custom_call.1} parent=47 // pred_region
        _
      $region52: #{tpu_custom_call.1} parent=47 // pred_fallthru
        _
    $region48: #{tpu_custom_call.1} parent=5 // pred_fallthru
      _
    %p816 = scmp.le.s32.totalorder 2, %s13
    // Predicated region
    $region53: #{tpu_custom_call.1} parent=5 // pred_check
      %p817 = pneg %p816
    $region54: #{tpu_custom_call.1} parent=5 // pred_check_branch
      %819 = sbr.rel (%p817) target = $region56
    $region55: #{tpu_custom_call.1} parent=5 // pred_region
      %s820 = ssub.s32 %s13, 2
      // Predicated region
      $region57: #{tpu_custom_call.1} parent=55 // pred_check
        %p821 = pneg %p194
      $region58: #{tpu_custom_call.1} parent=55 // pred_check_branch
        %823 = sbr.rel (%p821) target = $region60
      $region59: #{tpu_custom_call.1} parent=55 // pred_region
        %p824 = scmp.lt.s32.totalorder %s19, 1
        %s825 = scalar_select %p824, %s19, 1
        %s826 = smul.addr %s825, 4
        %s827 = smul.addr %s826, 8
        %s828 = scalar_lea.vmem %s7, %s827
      $region60: #{tpu_custom_call.1} parent=55 // pred_fallthru
        _
    $region56: #{tpu_custom_call.1} parent=5 // pred_fallthru
      _
  $region6: #{tpu_custom_call.1} parent=0 // loop_footer
    %s17 = sadd.s32 1, %s13
  $region7: #{tpu_custom_call.1} parent=0 // loop_footer_branch
    %12 = sbr.rel target = $region3
  $region8: #{tpu_custom_call.1} parent=0 // loop_exit
    _

</llo_original>
